<compile_context>
chip_gen: v6e
topology: v6e:2x2x1
jax: 0.10.0
libtpu: 0.0.40
codegen_flags: <defaults>
</compile_context>

<pallas_src>
import jax
import jax.numpy as jnp
from jax.experimental import pallas as pl
from jax.experimental.pallas import tpu as pltpu


def _dmv_kernel(mt_ref, x1_ref, x2_ref, out_ref):
    """One batch element.

    mt_ref : (E2a, E1a)        collapsed bilinear operator, transposed
    x1_ref : (1, E1a, HP)      [x1, 1] feature-major, positions (h*P+p) minor
    x2_ref : (1, C, E2a, HP)   [x2, 1] feature-major, pre-tiled over H on minor
    out_ref: (1, C, HP)        out[c, h*P + p]  (lane-dense minor axis)
    """
    # MXU: push x1 through the collapsed operator. (E2a,E1a)@(E1a,HP) -> (E2a,HP)
    z1 = jnp.dot(mt_ref[...], x1_ref[0], preferred_element_type=jnp.float32)
    # VPU: bilinear contraction over the (small) E2a axis. Positions stay on
    # the lane axis, so the reduction is row-adds (no XLU lane reduce) and the
    # (C, HP) result is stored with unmasked full-width vst.
    x2 = x2_ref[0].astype(jnp.float32)              # (C, E2a, HP)
    out = jnp.sum(z1[None, :, :] * x2, axis=1)      # (C, HP)
    out_ref[0] = out.astype(out_ref.dtype)


def dmv_factorized_bilinear(x1, x2, w1, b1, w2, b2, *, use_bf16=False):
    """w1: (n_in, r) == W1.T, b1: (r,);  w2: (n_in2, r) == W2.T, b2: (r,)."""
    squeeze = (x1.ndim == 4)
    if squeeze:                              # (h,d,v,e) / (c,d,v,e)
        x1, x2 = x1[None], x2[None]
    assert x1.ndim == 5 and x2.ndim == 5

    B, H, D, V, E1 = x1.shape
    _, C, _, _, E2 = x2.shape
    P = D * V
    HP = H * P
    E1a, E2a = E1 + 1, E2 + 1
    out_dtype = x1.dtype
    f32 = jnp.float32

    # --- Algebraic collapse of the two rank-r projections (exact) -----------
    w1f, w2f = w1.astype(f32), w2.astype(f32)
    b1f, b2f = b1.astype(f32), b2.astype(f32)
    m = w1f @ w2f.T                        # (E1, E2)
    c1 = w1f @ b2f                         # (E1,)
    c2 = w2f @ b1f                         # (E2,)
    k0 = jnp.dot(b1f, b2f)                 # ()
    maug = jnp.concatenate(
        [jnp.concatenate([m, c1[:, None]], axis=1),
         jnp.concatenate([c2[None, :], k0[None, None]], axis=1)],
        axis=0)                            # (E1a, E2a)
    maug_t = maug.T                        # (E2a, E1a)

    # --- Wrapper-side layout plumbing (all in HBM, done by XLA) -------------
    # x1: append ones feature, flatten (h,d,v) -> HP, features major so the
    # in-kernel matmul result (E2a, HP) has a lane-dense HP minor axis.
    x1a = jnp.concatenate([x1, jnp.ones(x1.shape[:-1] + (1,), x1.dtype)], -1)
    x1t = x1a.reshape(B, HP, E1a).transpose(0, 2, 1)          # (B, E1a, HP)
    # x2: same augmentation, features major, pre-tiled over H so its minor
    # axis aligns with z1's (h*P + p) position index.
    x2a = jnp.concatenate([x2, jnp.ones(x2.shape[:-1] + (1,), x2.dtype)], -1)
    x2t = x2a.reshape(B, C, P, E2a).transpose(0, 1, 3, 2)     # (B, C, E2a, P)
    x2t = jnp.tile(x2t, (1, 1, 1, H))                         # (B, C, E2a, HP)

    # bf16 on the MXU / HBM path (f32 accumulation stays in the kernel).
    in_dtype = jnp.bfloat16 if use_bf16 else f32
    mt_c = maug_t.astype(in_dtype)
    x1t_c = x1t.astype(in_dtype)
    x2t_c = x2t.astype(in_dtype)

    out_flat = pl.pallas_call(
        _dmv_kernel,
        out_shape=jax.ShapeDtypeStruct((B, C, HP), out_dtype),
        grid=(B,),
        in_specs=[
            pl.BlockSpec((E2a, E1a), lambda i: (0, 0)),
            pl.BlockSpec((1, E1a, HP), lambda i: (i, 0, 0)),
            pl.BlockSpec((1, C, E2a, HP), lambda i: (i, 0, 0, 0)),
        ],
        out_specs=pl.BlockSpec((1, C, HP), lambda i: (i, 0, 0)),
        compiler_params=pltpu.CompilerParams(
            dimension_semantics=("parallel",)),
    )(mt_c, x1t_c, x2t_c)

    # (B, C, H*P) -> (B, H, C, D, V)
    out = out_flat.reshape(B, C, H, D, V).transpose(0, 2, 1, 3, 4)
    if squeeze:
        out = out[0]
    return out


def _reference(x1, x2, w1, b1, w2, b2):
    y1 = x1 @ w1 + b1
    y2 = x2 @ w2 + b2
    if x1.ndim == 5:
        return jnp.einsum('bhdve,bcdve->bhcdv', y1, y2)
    return jnp.einsum('hdve,cdve->hcdv', y1, y2)


if __name__ == "__main__":
    # Module hyper-parameters.
    n_in, n_in2, r = 16, 12, 64
    # Input shapes (5-D branch): x1 (b, h, d, v, n_in), x2 (b, c, d, v, n_in2)
    B, H, C, D, V = 2, 4, 3, 4, 8

    key = jax.random.PRNGKey(0)
    k1, k2, k3, k4, k5, k6 = jax.random.split(key, 6)

    # Deterministic synthetic parameters (weights stored pre-transposed: (n_in, r)).
    w1 = jax.random.normal(k1, (n_in, r), jnp.float32) * 0.1
    b1 = jax.random.normal(k2, (r,), jnp.float32) * 0.1
    w2 = jax.random.normal(k3, (n_in2, r), jnp.float32) * 0.1
    b2 = jax.random.normal(k4, (r,), jnp.float32) * 0.1

    x1 = jax.random.normal(k5, (B, H, D, V, n_in), jnp.float32)
    x2 = jax.random.normal(k6, (B, C, D, V, n_in2), jnp.float32)

    ref5 = _reference(x1, x2, w1, b1, w2, b2)

    # 5-D branch, exact f32 path.
    out5 = jax.block_until_ready(dmv_factorized_bilinear(x1, x2, w1, b1, w2, b2))
    assert out5.shape == (B, H, C, D, V), out5.shape
    assert jnp.allclose(out5, ref5, atol=1e-3, rtol=1e-3), "5-D f32 mismatch"

    # 5-D branch, bf16 MXU/HBM path (f32 accumulation) — looser tolerance.
    out5_bf16 = jax.block_until_ready(
        dmv_factorized_bilinear(x1, x2, w1, b1, w2, b2, use_bf16=True))
    assert out5_bf16.shape == (B, H, C, D, V), out5_bf16.shape
    assert jnp.allclose(out5_bf16, ref5, atol=5e-2, rtol=5e-2), "5-D bf16 mismatch"

    # 4-D branch.
    out4 = jax.block_until_ready(
        dmv_factorized_bilinear(x1[0], x2[0], w1, b1, w2, b2))
    ref4 = _reference(x1[0], x2[0], w1, b1, w2, b2)
    assert out4.shape == (H, C, D, V), out4.shape
    assert jnp.allclose(out4, ref4, atol=1e-3, rtol=1e-3), "4-D mismatch"

    print("KERNEL_OK")
</pallas_src>

<mosaic_0001>
module attributes {stable_mosaic.version = 11 : i64} {
  func.func @_dmv_kernel(%arg0: i32, %arg1: memref<13x17xf32, #tpu.memory_space<vmem>>, %arg2: memref<1x17x128xf32, #tpu.memory_space<vmem>>, %arg3: memref<1x3x13x128xf32, #tpu.memory_space<vmem>>, %arg4: memref<1x3x128xf32, #tpu.memory_space<vmem>>) attributes {dimension_semantics = [#tpu.dimension_semantics<parallel>], iteration_bounds = array<i64: 2>, scalar_prefetch = 0 : i64, scratch_operands = 0 : i64, tpu.core_type = #tpu.core_type<tc>, window_params = [{pipeline_mode = #tpu.pipeline_mode<synchronous>, transform_indices = @transform_0, window_bounds = array<i64: 13, 17>}, {transform_indices = @transform_1, window_bounds = array<i64: 1, 17, 128>}, {transform_indices = @transform_2, window_bounds = array<i64: 1, 3, 13, 128>}, {transform_indices = @transform_3, window_bounds = array<i64: 1, 3, 128>}]} {
    %c0 = arith.constant 0 : index
    %c0_0 = arith.constant 0 : index
    %0 = vector.load %arg1[%c0, %c0_0] : memref<13x17xf32, #tpu.memory_space<vmem>>, vector<13x17xf32>
    %c0_1 = arith.constant 0 : index
    %c0_2 = arith.constant 0 : index
    %c0_3 = arith.constant 0 : index
    %1 = vector.load %arg2[%c0_1, %c0_2, %c0_3] : memref<1x17x128xf32, #tpu.memory_space<vmem>>, vector<1x17x128xf32>
    %2 = vector.shape_cast %1 : vector<1x17x128xf32> to vector<17x128xf32>
    %cst = arith.constant dense<0.000000e+00> : vector<13x128xf32>
    %3 = tpu.matmul %0, %2, %cst {dimension_numbers = #tpu.dot_dimension_numbers<[1], [0], [0], [1], [0, 0, 1, 1], [], []>} : vector<13x17xf32>, vector<17x128xf32>, vector<13x128xf32> -> vector<13x128xf32>
    %c0_4 = arith.constant 0 : index
    %c0_5 = arith.constant 0 : index
    %c0_6 = arith.constant 0 : index
    %c0_7 = arith.constant 0 : index
    %4 = vector.load %arg3[%c0_4, %c0_5, %c0_6, %c0_7] : memref<1x3x13x128xf32, #tpu.memory_space<vmem>>, vector<1x3x13x128xf32>
    %5 = vector.shape_cast %4 : vector<1x3x13x128xf32> to vector<3x13x128xf32>
    %6 = vector.shape_cast %3 : vector<13x128xf32> to vector<1x13x128xf32>
    %7 = vector.broadcast %6 : vector<1x13x128xf32> to vector<3x13x128xf32>
    %8 = arith.mulf %7, %5 : vector<3x13x128xf32>
    %cst_8 = arith.constant dense<0.000000e+00> : vector<3x128xf32>
    %9 = vector.multi_reduction <add>, %8, %cst_8 [1] : vector<3x13x128xf32> to vector<3x128xf32>
    %c0_9 = arith.constant 0 : index
    %c0_10 = arith.constant 0 : index
    %c0_11 = arith.constant 0 : index
    %10 = vector.load %arg4[%c0_9, %c0_10, %c0_11] : memref<1x3x128xf32, #tpu.memory_space<vmem>>, vector<1x3x128xf32>
    %11 = vector.shape_cast %10 : vector<1x3x128xf32> to vector<3x128xf32>
    %12 = vector.shape_cast %9 : vector<3x128xf32> to vector<1x3x128xf32>
    tpu.vector_store %arg4[%c0_9, %c0_10, %c0_11], %12 {strides = array<i32>} : memref<1x3x128xf32, #tpu.memory_space<vmem>>, vector<1x3x128xf32>,
    return
  }
  func.func @transform_0(%arg0: i32) -> (i32, i32) {
    %c0_i32 = arith.constant 0 : i32
    %c0_i32_0 = arith.constant 0 : i32
    %c0_i32_1 = arith.constant 0 : i32
    return %c0_i32, %c0_i32_0 : i32, i32
  }
  func.func @transform_1(%arg0: i32) -> (i32, i32, i32) {
    %c0_i32 = arith.constant 0 : i32
    %c0_i32_0 = arith.constant 0 : i32
    %c0_i32_1 = arith.constant 0 : i32
    return %arg0, %c0_i32, %c0_i32_0 : i32, i32, i32
  }
  func.func @transform_2(%arg0: i32) -> (i32, i32, i32, i32) {
    %c0_i32 = arith.constant 0 : i32
    %c0_i32_0 = arith.constant 0 : i32
    %c0_i32_1 = arith.constant 0 : i32
    %c0_i32_2 = arith.constant 0 : i32
    return %arg0, %c0_i32, %c0_i32_0, %c0_i32_1 : i32, i32, i32, i32
  }
  func.func @transform_3(%arg0: i32) -> (i32, i32, i32) {
    %c0_i32 = arith.constant 0 : i32
    %c0_i32_0 = arith.constant 0 : i32
    %c0_i32_1 = arith.constant 0 : i32
    return %arg0, %c0_i32, %c0_i32_0 : i32, i32, i32
  }
}

</mosaic_0001>

<llo_original>
// kernel: tpu_custom_call.1
$region0: #{tpu_custom_call.1}
  #allocation0 [shape = 'u32[]', space=smem, size = 0x4, offset = 0x4, fixed_abs, tag = 'smem constant byte address 0x4 - core index']
  #allocation1 [shape = 'u32[144,128]{1,0:T(1,128)}', space=vmem, size = 0x12000, scoped, tag = 'internal scratch']
  %s0 = inlined_call_operand.vmem [shape: f32[13,17], index: 0, kind: input, shape index: {}]
  %s1 = inlined_call_operand.vmem [shape: f32[2,17,128], index: 1, kind: input, shape index: {}]
  %s2 = inlined_call_operand.vmem [shape: f32[2,3,13,128], index: 2, kind: input, shape index: {}]
  %s3 = inlined_call_operand.vmem [shape: f32[2,3,128], index: 3, kind: output, shape index: {}]
  %s4 = sld [smem:[#allocation0]]
  $region45: #{tpu_custom_call.1} parent=0
    _
  %s6 = ssub.s32 1, %s4
  %s7 = scalar_select 0, %s6, %s4
  loop: start=0, step=1, limit=4
  $region2: #{tpu_custom_call.1} parent=0 // loop_pre_header
    _
  $region3: #{tpu_custom_call.1} parent=0 // loop_header
    %s9 = sphi 0, %s13
    %p10 = scmp.ge.s32.totalorder %s9, 4
    %s17 = sphi 0, %s17
    %s19 = sphi 0, %s17
    %s20 = sphi 0, %s19
    %s34 = sphi 0, %s20
    %s40 = sphi 0, %s42
    %s43 = sphi 0, %s40
    %s44 = sphi 0, %s43
    %s60 = sphi 0, %s44
    %s66 = sphi 0, %s68
    %s69 = sphi 0, %s66
    %s70 = sphi 0, %s69
    %s86 = sphi 0, %s70
    %s92 = sphi 0, %s94
    %s95 = sphi 0, %s92
    %s96 = sphi 0, %s95
    %s112 = sphi 0, %s96
  $region4: #{tpu_custom_call.1} parent=0 // loop_header_branch
    %12 = sbr.rel (%p10) target = $region8
  $region5: #{tpu_custom_call.1} parent=0 // loop_body
    %s14 = ssub.s32 %s9, 1
    %s15 = ssub.s32 %s9, 2
    %s16 = sadd.s32 %s9, 1
    %s18 = sadd.s32 %s17, 1
    %p21 = scmp.eq.s32.totalorder %s9, 1
    %p22 = scmp.ne.s32.totalorder %s17, %s19
    %p23 = scmp.eq.s32.totalorder %s9, 0
    %p24 = por %p22, %p23
    %p25 = scmp.ne.s32.totalorder %s17, %s19
    %p26 = scmp.eq.s32.totalorder %s14, 1
    %p27 = por %p25, %p26
    %p28 = scmp.ne.s32.totalorder %s19, %s20
    %p29 = scmp.eq.s32.totalorder %s14, 0
    %p30 = por %p28, %p29
    %p31 = scmp.ne.s32.totalorder %s19, %s20
    %p32 = scmp.eq.s32.totalorder %s15, 1
    %p33 = por %p31, %p32
    %p35 = scmp.ne.s32.totalorder %s20, %s34
    %p36 = scmp.eq.s32.totalorder %s15, 0
    %p37 = por %p35, %p36
    %s38 = ssub.s32 %s9, %s16
    %p39 = scmp.eq.s32.totalorder %s38, 0
    %s41 = sadd.s32 %s40, 1
    %s42 = scalar_select %p39, %s40, %s41
    %p45 = pneg %p39
    %p46 = scmp.eq.s32.totalorder %s9, 1
    %p47 = por %p45, %p46
    %p48 = scmp.ne.s32.totalorder %s40, %s43
    %p49 = scmp.eq.s32.totalorder %s9, 0
    %p50 = por %p48, %p49
    %p51 = scmp.ne.s32.totalorder %s40, %s43
    %p52 = scmp.eq.s32.totalorder %s14, 1
    %p53 = por %p51, %p52
    %p54 = scmp.ne.s32.totalorder %s43, %s44
    %p55 = scmp.eq.s32.totalorder %s14, 0
    %p56 = por %p54, %p55
    %p57 = scmp.ne.s32.totalorder %s43, %s44
    %p58 = scmp.eq.s32.totalorder %s15, 1
    %p59 = por %p57, %p58
    %p61 = scmp.ne.s32.totalorder %s44, %s60
    %p62 = scmp.eq.s32.totalorder %s15, 0
    %p63 = por %p61, %p62
    %s64 = ssub.s32 %s9, %s16
    %p65 = scmp.eq.s32.totalorder %s64, 0
    %s67 = sadd.s32 %s66, 1
    %s68 = scalar_select %p65, %s66, %s67
    %p71 = pneg %p65
    %p72 = scmp.eq.s32.totalorder %s9, 1
    %p73 = por %p71, %p72
    %p74 = scmp.ne.s32.totalorder %s66, %s69
    %p75 = scmp.eq.s32.totalorder %s9, 0
    %p76 = por %p74, %p75
    %p77 = scmp.ne.s32.totalorder %s66, %s69
    %p78 = scmp.eq.s32.totalorder %s14, 1
    %p79 = por %p77, %p78
    %p80 = scmp.ne.s32.totalorder %s69, %s70
    %p81 = scmp.eq.s32.totalorder %s14, 0
    %p82 = por %p80, %p81
    %p83 = scmp.ne.s32.totalorder %s69, %s70
    %p84 = scmp.eq.s32.totalorder %s15, 1
    %p85 = por %p83, %p84
    %p87 = scmp.ne.s32.totalorder %s70, %s86
    %p88 = scmp.eq.s32.totalorder %s15, 0
    %p89 = por %p87, %p88
    %s90 = ssub.s32 %s9, %s16
    %p91 = scmp.eq.s32.totalorder %s90, 0
    %s93 = sadd.s32 %s92, 1
    %s94 = scalar_select %p91, %s92, %s93
    %p97 = pneg %p91
    %p98 = scmp.eq.s32.totalorder %s9, 1
    %p99 = por %p97, %p98
    %p100 = scmp.ne.s32.totalorder %s92, %s95
    %p101 = scmp.eq.s32.totalorder %s9, 0
    %p102 = por %p100, %p101
    %p103 = scmp.ne.s32.totalorder %s92, %s95
    %p104 = scmp.eq.s32.totalorder %s14, 1
    %p105 = por %p103, %p104
    %p106 = scmp.ne.s32.totalorder %s95, %s96
    %p107 = scmp.eq.s32.totalorder %s14, 0
    %p108 = por %p106, %p107
    %p109 = scmp.ne.s32.totalorder %s95, %s96
    %p110 = scmp.eq.s32.totalorder %s15, 1
    %p111 = por %p109, %p110
    %p113 = scmp.ne.s32.totalorder %s96, %s112
    %p114 = scmp.eq.s32.totalorder %s15, 0
    %p115 = por %p113, %p114
    %p116 = scmp.le.s32.totalorder 1, %s9
    %p117 = scmp.lt.s32.totalorder %s9, 3
    %p118 = pnand %p116, %p117
    %p119 = pneg %p118
    // Predicated region
    $region9: #{tpu_custom_call.1} parent=5 // pred_check
      _
    $region10: #{tpu_custom_call.1} parent=5 // pred_check_branch
      %121 = sbr.rel (%p118) target = $region12
    $region11: #{tpu_custom_call.1} parent=5 // pred_region
      %s122 = ssub.s32 %s9, 1
      // Predicated region
      $region13: #{tpu_custom_call.1} parent=11 // pred_check
        %p123 = pneg %p30
      $region14: #{tpu_custom_call.1} parent=11 // pred_check_branch
        %125 = sbr.rel (%p123) target = $region16
      $region15: #{tpu_custom_call.1} parent=11 // pred_region
        _
      $region16: #{tpu_custom_call.1} parent=11 // pred_fallthru
        _
    $region12: #{tpu_custom_call.1} parent=5 // pred_fallthru
      _
    %p126 = scmp.lt.s32.totalorder %s9, 2
    // Predicated region
    $region17: #{tpu_custom_call.1} parent=5 // pred_check
      %p127 = pneg %p126
    $region18: #{tpu_custom_call.1} parent=5 // pred_check_branch
      %129 = sbr.rel (%p127) target = $region20
    $region19: #{tpu_custom_call.1} parent=5 // pred_region
      // Predicated region
      $region21: #{tpu_custom_call.1} parent=19 // pred_check
        %p130 = pneg %p50
      $region22: #{tpu_custom_call.1} parent=19 // pred_check_branch
        %132 = sbr.rel (%p130) target = $region24
      $region23: #{tpu_custom_call.1} parent=19 // pred_region
        %p133 = scmp.lt.s32.totalorder %s9, 1
        %s134 = scalar_select %p133, %s9, 1
        %s135 = smul.addr %s134, 3
        %s136 = smul.addr %s135, 8
        %s137 = scalar_lea.vmem %s1, %s136
      $region24: #{tpu_custom_call.1} parent=19 // pred_fallthru
        _
      // Predicated region
      $region25: #{tpu_custom_call.1} parent=19 // pred_check
        %p138 = pneg %p76
      $region26: #{tpu_custom_call.1} parent=19 // pred_check_branch
        %140 = sbr.rel (%p138) target = $region28
      $region27: #{tpu_custom_call.1} parent=19 // pred_region
        %p141 = scmp.lt.s32.totalorder %s9, 1
        %s142 = scalar_select %p141, %s9, 1
        %s143 = smul.addr %s142, 6
        %s144 = smul.addr %s143, 8
        %s145 = scalar_lea.vmem %s2, %s144
      $region28: #{tpu_custom_call.1} parent=19 // pred_fallthru
        _
    $region20: #{tpu_custom_call.1} parent=5 // pred_fallthru
      _
    %p146 = scmp.le.s32.totalorder 1, %s9
    %p147 = scmp.lt.s32.totalorder %s9, 3
    %p148 = pnand %p146, %p147
    %p149 = pneg %p148
    // Predicated region
    $region29: #{tpu_custom_call.1} parent=5 // pred_check
      _
    $region30: #{tpu_custom_call.1} parent=5 // pred_check_branch
      %151 = sbr.rel (%p148) target = $region32
    $region31: #{tpu_custom_call.1} parent=5 // pred_region
      %s152 = ssub.s32 %s9, 1
      %p153 = pneg %p30
      %p154 = pneg %p27
      %p155 = scmp.lt.s32.totalorder %s14, 1
      %s156 = scalar_select %p155, %s14, 1
      %s157 = smul.addr %s156, 3
      %s158 = smul.addr %s157, 8
      %s159 = scalar_lea.vmem %s1, %s158
      %p160 = pneg %p56
      %p161 = pneg %p53
      %p162 = scmp.lt.s32.totalorder %s14, 1
      %s163 = scalar_select %p162, %s14, 1
      %s164 = smul.addr %s163, 6
      %s165 = smul.addr %s164, 8
      %s166 = scalar_lea.vmem %s2, %s165
      %p167 = pneg %p82
      %p168 = pneg %p79
      %p169 = pneg %p108
      %p170 = pneg %p105
      %p171 = scmp.lt.s32.totalorder %s14, 1
      %s172 = scalar_select %p171, %s14, 1
      %s173 = smul.addr %s172, 4
      %s174 = scalar_lea.vmem %s3, %s173
      %p175 = scmp.lt.s32.totalorder %s14, 1
      %s176 = scalar_select %p175, %s14, 1
      %s177 = smul.addr %s176, 3
      %s178 = smul.addr %s177, 8
      %s179 = scalar_lea.vmem %s1, %s178
      %p180 = scmp.lt.s32.totalorder %s14, 1
      %s181 = scalar_select %p180, %s14, 1
      %s182 = smul.addr %s181, 6
      %s183 = smul.addr %s182, 8
      %s184 = scalar_lea.vmem %s2, %s183
      %p185 = scmp.lt.s32.totalorder %s14, 1
      %s186 = scalar_select %p185, %s14, 1
      %s187 = smul.addr %s186, 4
      %s188 = scalar_lea.vmem %s3, %s187
      %v189 = vld [vmem:[%s0] sm:$0xff]
      %v190 = vld [vmem:[%s0 + $0x8] sm:$0x1f]
      %v191 = vld [vmem:[%s179] sm:$0xff]
      %v192 = vld [vmem:[%s179 + $0x8] sm:$0xff]
      %v193 = vld [vmem:[%s179 + $0x10] sm:$0x1]
      %vm194 = vcmask 138240
      %v196 = vsel %vm194, %v189, 0
      %v199 = vsel %vm194, %v190, 0
      %vm201 = vcmask 1040384
      %v203 = vsel %vm201, %v193, 0
      %205 = vmatprep.subr.mxu0 0.0
      %206 = vmatpush1.msra.mxu0 0.0
      %207 = vmatprep.subr.mxu0 0.0
      %208 = vmatpush1.msra.mxu0 0.0
      %209 = vmatprep.subr.mxu0 0.0
      %210 = vmatpush1.msra.mxu0 0.0
      %211 = vmatprep.subr.mxu0 0.0
      %212 = vmatpush1.msra.mxu0 0.0
      %213 = vmatprep.subr.mxu0 0.0
      %214 = vmatpush1.msra.mxu0 0.0
      %215 = vmatprep.subr.mxu0 0.0
      %216 = vmatpush1.msra.mxu0 0.0
      %217 = vmatprep.subr.mxu0 0.0
      %218 = vmatpush1.msra.mxu0 0.0
      %219 = vmatprep.subr.mxu0 0.0
      %220 = vmatpush1.msra.mxu0 0.0
      %221 = vmatprep.subr.mxu0 0.0
      %222 = vmatpush1.msra.mxu0 0.0
      %223 = vmatprep.subr.mxu0 0.0
      %224 = vmatpush1.msra.mxu0 0.0
      %225 = vmatprep.subr.mxu0 0.0
      %226 = vmatpush1.msra.mxu0 0.0
      %227 = vmatprep.subr.mxu0 0.0
      %228 = vmatpush1.msra.mxu0 0.0
      %229 = vmatprep.subr.mxu0 0.0
      %230 = vmatpush1.msra.mxu0 0.0
      %231 = vmatprep.subr.mxu0 0.0
      %232 = vmatpush1.msra.mxu0 %v203
      %233 = vmatprep.subr.mxu0 0.0
      %234 = vmatpush1.msra.mxu0 %v192
      %235 = vmatprep.subr.mxu0 0.0
      %236 = vmatpush1.msra.mxu0 %v191
      %237 = vmatprep.subr.mxu0 0.0
      %238 = vmatpush2.msra.mxu0 0.0
      %239 = vmatprep.subr.mxu0 0.0
      %240 = vmatpush2.msra.mxu0 0.0
      %241 = vmatprep.subr.mxu0 0.0
      %242 = vmatpush2.msra.mxu0 0.0
      %243 = vmatprep.subr.mxu0 0.0
      %244 = vmatpush2.msra.mxu0 0.0
      %245 = vmatprep.subr.mxu0 0.0
      %246 = vmatpush2.msra.mxu0 0.0
      %247 = vmatprep.subr.mxu0 0.0
      %248 = vmatpush2.msra.mxu0 0.0
      %249 = vmatprep.subr.mxu0 0.0
      %250 = vmatpush2.msra.mxu0 0.0
      %251 = vmatprep.subr.mxu0 0.0
      %252 = vmatpush2.msra.mxu0 0.0
      %253 = vmatprep.subr.mxu0 0.0
      %254 = vmatpush2.msra.mxu0 0.0
      %255 = vmatprep.subr.mxu0 0.0
      %256 = vmatpush2.msra.mxu0 0.0
      %257 = vmatprep.subr.mxu0 0.0
      %258 = vmatpush2.msra.mxu0 0.0
      %259 = vmatprep.subr.mxu0 0.0
      %260 = vmatpush2.msra.mxu0 0.0
      %261 = vmatprep.subr.mxu0 0.0
      %262 = vmatpush2.msra.mxu0 0.0
      %263 = vmatprep.subr.mxu0 0.0
      %264 = vmatpush2.msra.mxu0 0.0
      %265 = vmatprep.subr.mxu0 0.0
      %266 = vmatpush2.msra.mxu0 0.0
      %267 = vmatprep.subr.mxu0 0.0
      %268 = vmatpush2.msra.mxu0 0.0
      %269 = vmatprep.mubr.f32.mxu0 0.0
      %270 = vmatmul.mubr.f32.gmra.mxu0 %v196
      %v271 = vpop.f32.mrf.mxu0
      %v272 = vadd.f32 0.0, %v271
      %v273 = vpop.f32.mrf.mxu0
      %274 = vmatprep.mubr.f32.mxu0 0.0
      %275 = vmatmul.mubr.f32.gmra.mxu0 %v199
      %v276 = vpop.f32.mrf.mxu0
      %v277 = vadd.f32 0.0, %v276
      %v278 = vpop.f32.mrf.mxu0
      %279 = vdwg.mxu0
      %v280 = vld [vmem:[%s184] sm:$0xff]
      %v281 = vld [vmem:[%s184 + $0x8] sm:$0x1f]
      %v282 = vld [vmem:[%s184 + $0x10] sm:$0xff]
      %v283 = vld [vmem:[%s184 + $0x18] sm:$0x1f]
      %v284 = vld [vmem:[%s184 + $0x20] sm:$0xff]
      %v285 = vld [vmem:[%s184 + $0x28] sm:$0x1f]
      %v286 = vmul.f32 %v272, %v280
      %v287 = vmul.f32 %v277, %v281
      %v288 = vmul.f32 %v272, %v282
      %v289 = vmul.f32 %v277, %v283
      %v290 = vmul.f32 %v272, %v284
      %v291 = vmul.f32 %v277, %v285
      %vm292 = vcmask 1044480
      %v293 = vsel %vm292, %v287, 0.0
      %v294 = vadd.f32 %v286, %v293
      %v295 = vrot.slane %v294, 4
      %v296 = vadd.f32 %v294, %v295
      %v297 = vrot.slane %v296, 2
      %v298 = vadd.f32 %v296, %v297
      %v299 = vrot.slane %v298, 1
      %v300 = vadd.f32 %v298, %v299
      %v301 = vsel %vm292, %v289, 0.0
      %v302 = vadd.f32 %v288, %v301
      %v303 = vrot.slane %v302, 4
      %v304 = vadd.f32 %v302, %v303
      %v305 = vrot.slane %v304, 2
      %v306 = vadd.f32 %v304, %v305
      %v307 = vrot.slane %v306, 1
      %v308 = vadd.f32 %v306, %v307
      %v309 = vsel %vm292, %v291, 0.0
      %v310 = vadd.f32 %v290, %v309
      %v311 = vrot.slane %v310, 4
      %v312 = vadd.f32 %v310, %v311
      %v313 = vrot.slane %v312, 2
      %v314 = vadd.f32 %v312, %v313
      %v315 = vrot.slane %v314, 1
      %v316 = vadd.f32 %v314, %v315
      %vm320 = vcmask 1041409
      %v321 = vsel %vm320, %v308, %v300
      %vm322 = vcmask 1042434
      %v323 = vsel %vm322, %v316, %v321
      %325 = vst [vmem:[%s188] sm:$0x7] %v323
      %p326 = scmp.lt.s32.totalorder %s14, 1
      %s327 = scalar_select %p326, %s14, 1
      %s328 = smul.addr %s327, 4
      %s329 = scalar_lea.vmem %s3, %s328
      // Predicated region
      $region33: #{tpu_custom_call.1} parent=31 // pred_check
        %p330 = pneg %p105
      $region34: #{tpu_custom_call.1} parent=31 // pred_check_branch
        %332 = sbr.rel (%p330) target = $region36
      $region35: #{tpu_custom_call.1} parent=31 // pred_region
        _
      $region36: #{tpu_custom_call.1} parent=31 // pred_fallthru
        _
    $region32: #{tpu_custom_call.1} parent=5 // pred_fallthru
      _
    %p333 = scmp.le.s32.totalorder 2, %s9
    // Predicated region
    $region37: #{tpu_custom_call.1} parent=5 // pred_check
      %p334 = pneg %p333
    $region38: #{tpu_custom_call.1} parent=5 // pred_check_branch
      %336 = sbr.rel (%p334) target = $region40
    $region39: #{tpu_custom_call.1} parent=5 // pred_region
      %s337 = ssub.s32 %s9, 2
      // Predicated region
      $region41: #{tpu_custom_call.1} parent=39 // pred_check
        %p338 = pneg %p111
      $region42: #{tpu_custom_call.1} parent=39 // pred_check_branch
        %340 = sbr.rel (%p338) target = $region44
      $region43: #{tpu_custom_call.1} parent=39 // pred_region
        %p341 = scmp.lt.s32.totalorder %s15, 1
        %s342 = scalar_select %p341, %s15, 1
        %s343 = smul.addr %s342, 4
        %s344 = scalar_lea.vmem %s3, %s343
      $region44: #{tpu_custom_call.1} parent=39 // pred_fallthru
        _
    $region40: #{tpu_custom_call.1} parent=5 // pred_fallthru
      _
  $region6: #{tpu_custom_call.1} parent=0 // loop_footer
    %s13 = sadd.s32 1, %s9
  $region7: #{tpu_custom_call.1} parent=0 // loop_footer_branch
    %8 = sbr.rel target = $region3
  $region8: #{tpu_custom_call.1} parent=0 // loop_exit
    _

</llo_original>
